<compile_context>
chip_gen: v6e
topology: v6e:2x2x1
jax: 0.10.0
libtpu: 0.0.40
codegen_flags: <defaults>
</compile_context>

<pallas_src>
import functools

import jax
import jax.numpy as jnp
from jax.experimental import pallas as pl
from jax.experimental.pallas import tpu as pltpu


def _ce_label_smooth_kernel(logits_ref, tgt_ref, out_ref, acc_ref, *,
                            epsilon, num_classes, batch, tile_b):
    i = pl.program_id(0)

    @pl.when(i == 0)
    def _init():
        acc_ref[0, 0] = jnp.float32(0.0)

    x = logits_ref[...].astype(jnp.float32)                 # (TB, C), f32 math
    tb, c = x.shape

    # Numerically stable log-softmax pieces; only per-row scalars are kept.
    m = jnp.max(x, axis=1, keepdims=True)                   # (TB, 1)
    shifted = x - m                                         # (TB, C)
    lse = jnp.log(jnp.sum(jnp.exp(shifted), axis=1, keepdims=True))  # (TB, 1)

    # Target-class shifted logit via a single iota compare + masked row sum
    # (replaces the full one-hot / smoothed-label (TB, C) temporaries).
    class_ids = jax.lax.broadcasted_iota(jnp.int32, (tb, c), 1)
    tgt = tgt_ref[...]                                      # (TB, 1) int32
    picked_shifted = jnp.sum(
        jnp.where(class_ids == tgt, shifted, 0.0), axis=1, keepdims=True)

    # sum_c log_prob = sum_c shifted - C * lse
    sum_shifted = jnp.sum(shifted, axis=1, keepdims=True)   # (TB, 1)

    picked_logprob = picked_shifted - lse                   # (TB, 1)
    sum_logprob = sum_shifted - jnp.float32(c) * lse        # (TB, 1)

    # Scalar smoothing coefficients applied to (TB, 1) vectors only.
    per_row = ((epsilon - 1.0) * picked_logprob
               - (epsilon / num_classes) * sum_logprob)     # (TB, 1)

    # Mask rows that only exist because the batch was padded to a tile multiple.
    row_ids = jax.lax.broadcasted_iota(jnp.int32, (tb, 1), 0) + i * tile_b
    per_row = jnp.where(row_ids < batch, per_row, 0.0)

    acc_ref[0, 0] += jnp.sum(per_row)

    @pl.when(i == pl.num_programs(0) - 1)
    def _finalize():
        # size_average=True: mean over batch -> multiply by precomputed 1/B.
        out_ref[0, 0] = acc_ref[0, 0] * jnp.float32(1.0 / batch)


def _choose_tile_b(batch, num_classes, budget_bytes=12 * 1024 * 1024):
    """Largest multiple-of-8 batch tile whose double-buffered f32 logits fit."""
    max_tb = budget_bytes // (2 * num_classes * 4)
    max_tb = max(8, (max_tb // 8) * 8)
    b_rounded = -(-batch // 8) * 8
    return int(min(b_rounded, max_tb, 1024))


def cross_entropy_label_smooth(logits, targets, *, num_classes, epsilon=0.1,
                               tile_b=None):
    """logits: (B, C) float (f32 or bf16), targets: (B,) int -> scalar f32 loss."""
    B, C = logits.shape
    assert C == num_classes

    if tile_b is None:
        tile_b = _choose_tile_b(B, C)

    pad_b = -(-B // tile_b) * tile_b
    if pad_b != B:
        logits = jnp.pad(logits, ((0, pad_b - B), (0, 0)))
        targets = jnp.pad(targets, (0, pad_b - B))
    tgt2d = targets.astype(jnp.int32).reshape(pad_b, 1)

    kernel = functools.partial(
        _ce_label_smooth_kernel,
        epsilon=float(epsilon),
        num_classes=num_classes,
        batch=B,
        tile_b=tile_b,
    )

    out = pl.pallas_call(
        kernel,
        out_shape=jax.ShapeDtypeStruct((1, 1), jnp.float32),
        grid=(pad_b // tile_b,),
        in_specs=[
            pl.BlockSpec((tile_b, C), lambda i: (i, 0)),     # logits tile (VMEM)
            pl.BlockSpec((tile_b, 1), lambda i: (i, 0)),     # targets tile (VMEM)
        ],
        out_specs=pl.BlockSpec(memory_space=pltpu.SMEM),     # scalar result
        scratch_shapes=[pltpu.SMEM((1, 1), jnp.float32)],    # running sum
        compiler_params=pltpu.CompilerParams(
            dimension_semantics=("arbitrary",),              # batch axis is a reduction
            vmem_limit_bytes=32 * 1024 * 1024,
        ),
    )(logits, tgt2d)
    return out[0, 0]


def _reference(logits, targets, num_classes, epsilon=0.1):
    log_probs = jax.nn.log_softmax(logits.astype(jnp.float32), axis=1)
    onehot = jax.nn.one_hot(targets, num_classes, dtype=jnp.float32)
    smooth = (1.0 - epsilon) * onehot + epsilon / num_classes
    return jnp.sum(jnp.mean(-smooth * log_probs, axis=0))


if __name__ == "__main__":
    key = jax.random.PRNGKey(0)
    k1, k2 = jax.random.split(key)

    B, num_classes = 8, 32
    logits = jax.random.normal(k1, (B, num_classes), dtype=jnp.float32)
    targets = jax.random.randint(k2, (B,), 0, num_classes, dtype=jnp.int32)

    loss = cross_entropy_label_smooth(logits, targets, num_classes=num_classes)
    loss = jax.block_until_ready(loss)

    ref = _reference(logits, targets, num_classes)
    assert jnp.allclose(loss, ref, atol=1e-5, rtol=1e-5), (loss, ref)

    # Also exercise a batch that is not a multiple of the tile (padding/masking path).
    B2 = 13
    logits2 = jax.random.normal(k1, (B2, num_classes), dtype=jnp.float32)
    targets2 = jax.random.randint(k2, (B2,), 0, num_classes, dtype=jnp.int32)
    loss2 = jax.block_until_ready(
        cross_entropy_label_smooth(logits2, targets2, num_classes=num_classes))
    ref2 = _reference(logits2, targets2, num_classes)
    assert jnp.allclose(loss2, ref2, atol=1e-5, rtol=1e-5), (loss2, ref2)

    print("KERNEL_OK")
</pallas_src>

<mosaic_0001>
module attributes {stable_mosaic.version = 11 : i64} {
  func.func @_ce_label_smooth_kernel(%arg0: i32, %arg1: memref<8x32xf32, #tpu.memory_space<vmem>>, %arg2: memref<8x1xi32, #tpu.memory_space<vmem>>, %arg3: memref<1x1xf32, #tpu.memory_space<smem>>, %arg4: memref<1x1xf32, #tpu.memory_space<smem>>) attributes {dimension_semantics = [#tpu.dimension_semantics<arbitrary>], iteration_bounds = array<i64: 1>, scalar_prefetch = 0 : i64, scratch_operands = 1 : i64, tpu.core_type = #tpu.core_type<tc>, window_params = [{transform_indices = @transform_0, window_bounds = array<i64: 8, 32>}, {transform_indices = @transform_1, window_bounds = array<i64: 8, 1>}, {transform_indices = @transform_2, window_bounds = array<i64: 1, 1>}]} {
    %c0_i32 = arith.constant 0 : i32
    %0 = arith.cmpi eq, %arg0, %c0_i32 : i32
    %1 = arith.extui %0 : i1 to i32
    %c0_i32_0 = arith.constant 0 : i32
    %2 = arith.cmpi ne, %1, %c0_i32_0 : i32
    scf.if %2 {
      %cst_20 = arith.constant 0.000000e+00 : f32
      %c0_21 = arith.constant 0 : index
      %c0_22 = arith.constant 0 : index
      %49 = memref.load %arg4[%c0_21, %c0_22] : memref<1x1xf32, #tpu.memory_space<smem>>
      memref.store %cst_20, %arg4[%c0_21, %c0_22] : memref<1x1xf32, #tpu.memory_space<smem>>
    } else {
    }
    %c0 = arith.constant 0 : index
    %c0_1 = arith.constant 0 : index
    %3 = vector.load %arg1[%c0, %c0_1] : memref<8x32xf32, #tpu.memory_space<vmem>>, vector<8x32xf32>
    %cst = arith.constant dense<0xFF800000> : vector<8xf32>
    %4 = vector.multi_reduction <maximumf>, %3, %cst [1] : vector<8x32xf32> to vector<8xf32>
    %5 = vector.shape_cast %4 : vector<8xf32> to vector<8x1xf32>
    %6 = vector.broadcast %5 : vector<8x1xf32> to vector<8x32xf32>
    %7 = arith.subf %3, %6 : vector<8x32xf32>
    %8 = math.exp %7 : vector<8x32xf32>
    %cst_2 = arith.constant dense<0.000000e+00> : vector<8xf32>
    %9 = vector.multi_reduction <add>, %8, %cst_2 [1] : vector<8x32xf32> to vector<8xf32>
    %10 = vector.shape_cast %9 : vector<8xf32> to vector<8x1xf32>
    %11 = math.log %10 : vector<8x1xf32>
    %12 = tpu.iota {dimensions = array<i32: 1>} : vector<8x32xi32>
    %c0_3 = arith.constant 0 : index
    %c0_4 = arith.constant 0 : index
    %13 = vector.load %arg2[%c0_3, %c0_4] : memref<8x1xi32, #tpu.memory_space<vmem>>, vector<8x1xi32>
    %14 = vector.broadcast %13 : vector<8x1xi32> to vector<8x32xi32>
    %15 = arith.cmpi eq, %12, %14 : vector<8x32xi32>
    %cst_5 = arith.constant 0.000000e+00 : f32
    %16 = vector.broadcast %cst_5 : f32 to vector<8x32xf32>
    %17 = arith.select %15, %7, %16 : vector<8x32xi1>, vector<8x32xf32>
    %cst_6 = arith.constant dense<0.000000e+00> : vector<8xf32>
    %18 = vector.multi_reduction <add>, %17, %cst_6 [1] : vector<8x32xf32> to vector<8xf32>
    %19 = vector.shape_cast %18 : vector<8xf32> to vector<8x1xf32>
    %cst_7 = arith.constant dense<0.000000e+00> : vector<8xf32>
    %20 = vector.multi_reduction <add>, %7, %cst_7 [1] : vector<8x32xf32> to vector<8xf32>
    %21 = vector.shape_cast %20 : vector<8xf32> to vector<8x1xf32>
    %22 = arith.subf %19, %11 : vector<8x1xf32>
    %cst_8 = arith.constant 3.200000e+01 : f32
    %23 = vector.broadcast %cst_8 : f32 to vector<8x1xf32>
    %24 = arith.mulf %23, %11 : vector<8x1xf32>
    %25 = arith.subf %21, %24 : vector<8x1xf32>
    %cst_9 = arith.constant -0.899999976 : f32
    %26 = vector.broadcast %cst_9 : f32 to vector<8x1xf32>
    %27 = arith.mulf %26, %22 : vector<8x1xf32>
    %cst_10 = arith.constant 3.125000e-03 : f32
    %28 = vector.broadcast %cst_10 : f32 to vector<8x1xf32>
    %29 = arith.mulf %28, %25 : vector<8x1xf32>
    %30 = arith.subf %27, %29 : vector<8x1xf32>
    %31 = tpu.iota {dimensions = array<i32: 0>} : vector<8x1xi32>
    %c8_i32 = arith.constant 8 : i32
    %32 = arith.muli %arg0, %c8_i32 : i32
    %33 = vector.broadcast %32 : i32 to vector<8x1xi32>
    %34 = arith.addi %31, %33 : vector<8x1xi32>
    %c8_i32_11 = arith.constant 8 : i32
    %35 = vector.broadcast %c8_i32_11 : i32 to vector<8x1xi32>
    %36 = arith.cmpi slt, %34, %35 : vector<8x1xi32>
    %cst_12 = arith.constant 0.000000e+00 : f32
    %37 = vector.broadcast %cst_12 : f32 to vector<8x1xf32>
    %38 = arith.select %36, %30, %37 : vector<8x1xi1>, vector<8x1xf32>
    %c0_13 = arith.constant 0 : index
    %c0_14 = arith.constant 0 : index
    %39 = memref.load %arg4[%c0_13, %c0_14] : memref<1x1xf32, #tpu.memory_space<smem>>
    %40 = vector.shape_cast %38 : vector<8x1xf32> to vector<1x8x1xf32>
    %cst_15 = arith.constant dense<0.000000e+00> : vector<1xf32>
    %41 = vector.multi_reduction <add>, %40, %cst_15 [1, 2] : vector<1x8x1xf32> to vector<1xf32>
    %42 = vector.shape_cast %41 : vector<1xf32> to vector<1x1x1xf32>
    %43 = vector.extract %42[0, 0, 0] : f32 from vector<1x1x1xf32>
    %44 = arith.addf %39, %43 : f32
    %c0_16 = arith.constant 0 : index
    %c0_17 = arith.constant 0 : index
    %45 = memref.load %arg4[%c0_16, %c0_17] : memref<1x1xf32, #tpu.memory_space<smem>>
    memref.store %44, %arg4[%c0_16, %c0_17] : memref<1x1xf32, #tpu.memory_space<smem>>
    %c0_i32_18 = arith.constant 0 : i32
    %46 = arith.cmpi eq, %arg0, %c0_i32_18 : i32
    %47 = arith.extui %46 : i1 to i32
    %c0_i32_19 = arith.constant 0 : i32
    %48 = arith.cmpi ne, %47, %c0_i32_19 : i32
    scf.if %48 {
      %c0_20 = arith.constant 0 : index
      %c0_21 = arith.constant 0 : index
      %49 = memref.load %arg4[%c0_20, %c0_21] : memref<1x1xf32, #tpu.memory_space<smem>>
      %cst_22 = arith.constant 1.250000e-01 : f32
      %50 = arith.mulf %49, %cst_22 : f32
      %c0_23 = arith.constant 0 : index
      %c0_24 = arith.constant 0 : index
      %51 = memref.load %arg3[%c0_23, %c0_24] : memref<1x1xf32, #tpu.memory_space<smem>>
      memref.store %50, %arg3[%c0_23, %c0_24] : memref<1x1xf32, #tpu.memory_space<smem>>
    } else {
    }
    return
  }
  func.func @transform_0(%arg0: i32) -> (i32, i32) {
    %c0_i32 = arith.constant 0 : i32
    %c0_i32_0 = arith.constant 0 : i32
    return %arg0, %c0_i32 : i32, i32
  }
  func.func @transform_1(%arg0: i32) -> (i32, i32) {
    %c0_i32 = arith.constant 0 : i32
    %c0_i32_0 = arith.constant 0 : i32
    return %arg0, %c0_i32 : i32, i32
  }
  func.func @transform_2(%arg0: i32) -> (i32, i32) {
    %c0_i32 = arith.constant 0 : i32
    %c0_i32_0 = arith.constant 0 : i32
    %c0_i32_1 = arith.constant 0 : i32
    return %c0_i32, %c0_i32_0 : i32, i32
  }
}

</mosaic_0001>

<llo_original>
// kernel: tpu_custom_call.1
$region0: #{tpu_custom_call.1}
  #allocation0 [shape = 'u32[]', space=smem, size = 0x4, offset = 0x4, fixed_abs, tag = 'smem constant byte address 0x4 - core index']
  #allocation1 [shape = 'u32[144,128]{1,0:T(1,128)}', space=vmem, size = 0x12000, scoped, tag = 'internal scratch']
  #allocation2 [shape = 'f32[1,1]{1,0:T(1,128)}', space=smem, size = 0x200, scoped, tag = 'scratch operand']
  %s0 = inlined_call_operand.vmem [shape: f32[8,32], index: 0, kind: input, shape index: {}]
  %s1 = inlined_call_operand.vmem [shape: s32[8,1], index: 1, kind: input, shape index: {}]
  %s2 = inlined_call_operand.hbm [shape: f32[1,1], index: 2, kind: output, shape index: {}]
  %s3 = sld [smem:[#allocation0]]
  $region26: #{tpu_custom_call.1} parent=0
    _
  %s5 = ssub.s32 1, %s3
  %s6 = scalar_select 0, %s5, %s3
  $region1: #{tpu_custom_call.1} parent=0
    #allocation3 [shape = 'u8[512]{0}', space=smem, size = 0x200, scoped, tag = 'output window, operand 0, single buffered']
    #allocation4 [shape = 's32[1]{0}', space=sflag, size = 0x4, scoped, tag = 'scoped memory for tpu_custom_call.1']
    %7 = vsyncpa [#allocation4], 0
    // Predicated region
    $region2: #{tpu_custom_call.1} parent=1 // pred_check
      _
    $region3: #{tpu_custom_call.1} parent=1 // pred_check_branch
      %9 = sbr.rel (0) target = $region5
    $region4: #{tpu_custom_call.1} parent=1 // pred_region
      _
    $region5: #{tpu_custom_call.1} parent=1 // pred_fallthru
      _
    // Predicated region
    $region6: #{tpu_custom_call.1} parent=1 // pred_check
      _
    $region7: #{tpu_custom_call.1} parent=1 // pred_check_branch
      %11 = sbr.rel (0) target = $region9
    $region8: #{tpu_custom_call.1} parent=1 // pred_region
      _
    $region9: #{tpu_custom_call.1} parent=1 // pred_fallthru
      _
    %p12 = scmp.eq.s32.totalorder 0, 0
    // Predicated region
    $region10: #{tpu_custom_call.1} parent=1 // pred_check
      %p13 = pneg %p12
    $region11: #{tpu_custom_call.1} parent=1 // pred_check_branch
      %15 = sbr.rel (%p13) target = $region13
    $region12: #{tpu_custom_call.1} parent=1 // pred_region
      %s16 = scalar_lea.smem [#allocation2], 0
      %17 = sst [smem:[%s16]] 0.0
    $region13: #{tpu_custom_call.1} parent=1 // pred_fallthru
      _
    %v18 = vld [vmem:[%s0] sm:$0xff]
    %vm19 = vcmask 261120
    %v20 = vsel %vm19, %v18, -inf
    %21 = vmax.xlane.f32.xlu0 %v20
    %v22 = vpop.xlane.xlu0 %21
    %v23 = vsub.f32 %v18, %v22
    %v24 = vmul.f32 %v23, 1.442695
    %v25 = vpow.pop %v24
    %v26 = vsel %vm19, %v25, 0.0
    %27 = vadd.xlane.f32.xlu0 %v26
    %v28 = vpop.xlane.xlu0 %27
    %v29 = vlog2.pop %v28
    %v30 = vmul.f32 %v29, 0.6931472
    %v31 = vlaneseq
    %v32 = vand.u32 %v31, 127
    %v33 = vld [vmem:[%s1] sm:$0xff]
    %34 = vset.pattern.permute.xlu0 0
    %35 = vperm.xlu0 %34, %v33
    %v36 = vpop.permute.xlu0 %35
    %vm37 = vcmp.eq.s32.totalorder %v32, %v36
    %v38 = vsel %vm37, %v23, 0.0
    %v39 = vsel %vm19, %v38, 0.0
    %40 = vadd.xlane.f32.xlu0 %v39
    %v41 = vpop.xlane.xlu0 %40
    %v42 = vsel %vm19, %v23, 0.0
    %43 = vadd.xlane.f32.xlu0 %v42
    %v44 = vpop.xlane.xlu0 %43
    %v45 = vsub.f32 %v41, %v30
    %v46 = vmul.f32 %v30, 32.0
    %v47 = vsub.f32 %v44, %v46
    %v48 = vmul.f32 %v45, -0.9
    %v49 = vmul.f32 %v47, 0.003125
    %v50 = vsub.f32 %v48, %v49
    %v51 = vlaneseq
    %v52 = vshrl.u32 %v51, 7
    %s53 = smul.u32 0, 8
    %v54 = vstv %s53
    %v55 = vadd.s32 %v52, %v54
    %vm56 = vcmp.lt.s32.totalorder %v55, 8
    %v57 = vsel %vm56, %v50, 0.0
    %s58 = sld [smem:[#allocation2]]
    %vm59 = vcmask 7168
    %v60 = vsel %vm59, %v57, 0.0
    %61 = vadd.xlane.f32.xlu0 %v60
    %v62 = vpop.xlane.xlu0 %61
    %v63 = vrot.slane %v62, 4
    %v64 = vadd.f32 %v62, %v63
    %v65 = vrot.slane %v64, 2
    %v66 = vadd.f32 %v64, %v65
    %v67 = vrot.slane %v66, 1
    %v68 = vadd.f32 %v66, %v67
    %s69 = vtos %v68
    %s70 = sadd.f32 %s58, %s69
    %s71 = scalar_lea.smem [#allocation2], 0
    %72 = sst [smem:[%s71]] %s70
    // Predicated region
    $region14: #{tpu_custom_call.1} parent=1 // pred_check
      %p73 = pneg %p12
    $region15: #{tpu_custom_call.1} parent=1 // pred_check_branch
      %75 = sbr.rel (%p73) target = $region17
    $region16: #{tpu_custom_call.1} parent=1 // pred_region
      %s76 = sld [smem:[#allocation2]]
      %s77 = smul.f32 %s76, 0.125
      %s78 = scalar_lea.smem [#allocation3], 0
      %79 = sst [smem:[%s78]] %s77
    $region17: #{tpu_custom_call.1} parent=1 // pred_fallthru
      _
    // Predicated region
    $region18: #{tpu_custom_call.1} parent=1 // pred_check
      _
    $region19: #{tpu_custom_call.1} parent=1 // pred_check_branch
      %81 = sbr.rel (0) target = $region21
    $region20: #{tpu_custom_call.1} parent=1 // pred_region
      %s83 = ssub.s32 16, 16
      %84 = vsyncadd [#allocation4], %s83
      %87 = dma.smem_to_hbm [#allocation3], 16, %s2, [#allocation4]
    $region21: #{tpu_custom_call.1} parent=1 // pred_fallthru
      _
    // Predicated region
    $region22: #{tpu_custom_call.1} parent=1 // pred_check
      _
    $region23: #{tpu_custom_call.1} parent=1 // pred_check_branch
      %89 = sbr.rel (0) target = $region25
    $region24: #{tpu_custom_call.1} parent=1 // pred_region
      %90 = dma.done [#allocation4], 16
    $region25: #{tpu_custom_call.1} parent=1 // pred_fallthru
      _
    %91 = sfence
    %92 = vsyncpa [#allocation4], 1

</llo_original>
